<compile_context>
chip_gen: v7x
topology: tpu7x:2x2x1
jax: 0.10.0
libtpu: 0.0.40
codegen_flags: <defaults>
</compile_context>

<pallas_src>
import functools

import jax
import jax.numpy as jnp
from jax.experimental import pallas as pl
from jax.experimental.pallas import tpu as pltpu


def actor_critic_kernel(x_ref,
                        w1_ref, b1_ref,
                        w2_ref, b2_ref,
                        wh_ref, bh_ref,
                        out_ref):
    """One batch-tile of the MLP forward.  pi/v heads are fused into wh/bh."""
    # bf16 operands on the MXU, f32 accumulation; bias-add / ReLU in f32 (VPU).
    x = x_ref[...].astype(jnp.bfloat16)

    h1 = jnp.dot(x, w1_ref[...], preferred_element_type=jnp.float32) + b1_ref[...]
    h1 = jnp.maximum(h1, 0.0).astype(jnp.bfloat16)

    h2 = jnp.dot(h1, w2_ref[...], preferred_element_type=jnp.float32) + b2_ref[...]
    h2 = jnp.maximum(h2, 0.0).astype(jnp.bfloat16)

    out = jnp.dot(h2, wh_ref[...], preferred_element_type=jnp.float32) + bh_ref[...]
    out_ref[...] = out.astype(out_ref.dtype)


def _choose_batch_tile(batch, batch_tile):
    """Pick (tile, padded_batch) with a mem-bound cost model.

    cost = padded rows (HBM bytes scale 1:1) + per-grid-step overhead
    (~0.35 us/step, i.e. worth a few hundred rows of bandwidth at these tiny
    feature widths).  Whenever there are >= 16 rows we force >= 2 grid steps
    so v7x's two TensorCores both get work under "parallel" semantics.
    """
    rounded = max(8, pl.cdiv(batch, 8) * 8)
    upper = min(max(8, (batch_tile // 8) * 8), rounded)
    if rounded >= 16:
        upper = min(upper, max(8, (rounded // 2) // 8 * 8))
    best = None
    for tb in range(8, upper + 1, 8):
        steps = pl.cdiv(rounded, tb)
        padded = steps * tb
        cost = padded + 512 * steps
        if best is None or cost < best[0]:
            best = (cost, tb, padded)
    return best[1], best[2]


def prepare_params(params):
    """One-time parameter prep (hoisted off the per-call hot path).

    Fuses the pi/v heads into a single [fc2, n_actions + 1] matmul and casts
    the weight matrices to bf16.  Biases stay f32 (added after the f32
    accumulate inside the kernel)."""
    w_heads = jnp.concatenate([params["wpi"], params["wv"]], axis=1)
    b_heads = jnp.concatenate([params["bpi"], params["bv"]], axis=1)
    return {
        "w1": params["w1"].astype(jnp.bfloat16),
        "b1": params["b1"].astype(jnp.float32),
        "w2": params["w2"].astype(jnp.bfloat16),
        "b2": params["b2"].astype(jnp.float32),
        "wh": w_heads.astype(jnp.bfloat16),
        "bh": b_heads.astype(jnp.float32),
    }


@functools.partial(jax.jit, static_argnames=("batch_tile",))
def actor_critic_forward(x, prepared, batch_tile=256):
    """x: [batch, input_dims].  Returns (pi [batch, n_actions], v [batch, 1])."""
    batch, input_dims = x.shape
    n_heads = prepared["wh"].shape[1]          # n_actions + 1 (value column)
    n_actions = n_heads - 1

    tb, padded_batch = _choose_batch_tile(batch, batch_tile)
    if padded_batch != batch:
        x = jnp.pad(x, ((0, padded_batch - batch), (0, 0)))
    grid = (padded_batch // tb,)

    args = (x,
            prepared["w1"], prepared["b1"],
            prepared["w2"], prepared["b2"],
            prepared["wh"], prepared["bh"])

    def x_map(i):
        return (i, 0)

    def resident_map(i):           # weights/biases stay resident in VMEM
        return (0, 0)

    in_specs = [pl.BlockSpec((tb, input_dims), x_map)]
    in_specs += [pl.BlockSpec(a.shape, resident_map) for a in args[1:]]

    # Narrow output: last block dim == full array dim, so a (tb, n_heads)
    # block is legal; writeback is 4*n_heads bytes/row instead of 512 B/row.
    out_specs = pl.BlockSpec((tb, n_heads), x_map)

    out = pl.pallas_call(
        actor_critic_kernel,
        out_shape=jax.ShapeDtypeStruct((padded_batch, n_heads), jnp.float32),
        grid=grid,
        in_specs=in_specs,
        out_specs=out_specs,
        compiler_params=pltpu.CompilerParams(
            dimension_semantics=("parallel",)),
    )(*args)

    heads = out[:batch]            # slice the narrow slab once, then split
    pi = heads[:, :n_actions]
    v = heads[:, n_actions:]
    return pi, v


def init_params(key, input_dims, fc1_dims, fc2_dims, n_actions):
    """Deterministic init mimicking nn.Linear default (U[-1/sqrt(in), 1/sqrt(in)]).

    Weights stored as [in_features, out_features] (transpose of PyTorch's)."""
    def linear(key, fan_in, fan_out):
        kw, kb = jax.random.split(key)
        bound = 1.0 / jnp.sqrt(fan_in)
        w = jax.random.uniform(kw, (fan_in, fan_out), jnp.float32, -bound, bound)
        b = jax.random.uniform(kb, (1, fan_out), jnp.float32, -bound, bound)
        return w, b

    k1, k2, k3, k4 = jax.random.split(key, 4)
    w1, b1 = linear(k1, input_dims, fc1_dims)
    w2, b2 = linear(k2, fc1_dims, fc2_dims)
    wpi, bpi = linear(k3, fc2_dims, n_actions)
    wv, bv = linear(k4, fc2_dims, 1)
    return {"w1": w1, "b1": b1, "w2": w2, "b2": b2,
            "wpi": wpi, "bpi": bpi, "wv": wv, "bv": bv}


def reference_forward(x, p):
    h1 = jnp.maximum(x @ p["w1"] + p["b1"], 0.0)
    h2 = jnp.maximum(h1 @ p["w2"] + p["b2"], 0.0)
    return h2 @ p["wpi"] + p["bpi"], h2 @ p["wv"] + p["bv"]


# TODO(synk): Adam optimizer, device placement, and Categorical sampling from
# the PyTorch class are training/inference plumbing, not part of forward().

if __name__ == "__main__":
    # Small shapes consistent with the module's forward.
    batch = 8
    input_dims = 32
    fc1_dims = 64
    fc2_dims = 64
    n_actions = 4

    key = jax.random.PRNGKey(0)
    k_obs, k_params = jax.random.split(key)

    observation = jax.random.normal(k_obs, (batch, input_dims), jnp.float32)
    params = init_params(k_params, input_dims, fc1_dims, fc2_dims, n_actions)
    prepared = prepare_params(params)          # head fusion + bf16 cast, once

    pi, v = actor_critic_forward(observation, prepared)
    jax.block_until_ready((pi, v))

    # Sanity-check against a pure-JAX f32 reference (bf16 weights => loose tol).
    pi_ref, v_ref = reference_forward(observation, params)
    assert pi.shape == (batch, n_actions) and v.shape == (batch, 1)
    assert jnp.allclose(pi, pi_ref, atol=5e-2, rtol=5e-2)
    assert jnp.allclose(v, v_ref, atol=5e-2, rtol=5e-2)

    print("KERNEL_OK")
</pallas_src>

<mosaic_0001>
module attributes {stable_mosaic.version = 11 : i64} {
  func.func @actor_critic_kernel(%arg0: i32, %arg1: memref<8x32xf32, #tpu.memory_space<vmem>>, %arg2: memref<32x64xbf16, #tpu.memory_space<vmem>>, %arg3: memref<1x64xf32, #tpu.memory_space<vmem>>, %arg4: memref<64x64xbf16, #tpu.memory_space<vmem>>, %arg5: memref<1x64xf32, #tpu.memory_space<vmem>>, %arg6: memref<64x5xbf16, #tpu.memory_space<vmem>>, %arg7: memref<1x5xf32, #tpu.memory_space<vmem>>, %arg8: memref<8x5xf32, #tpu.memory_space<vmem>>) attributes {dimension_semantics = [#tpu.dimension_semantics<parallel>], iteration_bounds = array<i64: 1>, scalar_prefetch = 0 : i64, scratch_operands = 0 : i64, tpu.core_type = #tpu.core_type<tc>, window_params = [{transform_indices = @transform_0, window_bounds = array<i64: 8, 32>}, {pipeline_mode = #tpu.pipeline_mode<synchronous>, transform_indices = @transform_1, window_bounds = array<i64: 32, 64>}, {pipeline_mode = #tpu.pipeline_mode<synchronous>, transform_indices = @transform_2, window_bounds = array<i64: 1, 64>}, {pipeline_mode = #tpu.pipeline_mode<synchronous>, transform_indices = @transform_3, window_bounds = array<i64: 64, 64>}, {pipeline_mode = #tpu.pipeline_mode<synchronous>, transform_indices = @transform_4, window_bounds = array<i64: 1, 64>}, {pipeline_mode = #tpu.pipeline_mode<synchronous>, transform_indices = @transform_5, window_bounds = array<i64: 64, 5>}, {pipeline_mode = #tpu.pipeline_mode<synchronous>, transform_indices = @transform_6, window_bounds = array<i64: 1, 5>}, {transform_indices = @transform_7, window_bounds = array<i64: 8, 5>}]} {
    %c0 = arith.constant 0 : index
    %c0_0 = arith.constant 0 : index
    %0 = vector.load %arg1[%c0, %c0_0] : memref<8x32xf32, #tpu.memory_space<vmem>>, vector<8x32xf32>
    %1 = arith.truncf %0 : vector<8x32xf32> to vector<8x32xbf16>
    %c0_1 = arith.constant 0 : index
    %c0_2 = arith.constant 0 : index
    %2 = vector.load %arg2[%c0_1, %c0_2] : memref<32x64xbf16, #tpu.memory_space<vmem>>, vector<32x64xbf16>
    %cst = arith.constant dense<0.000000e+00> : vector<8x64xf32>
    %3 = tpu.matmul %1, %2, %cst {dimension_numbers = #tpu.dot_dimension_numbers<[1], [0], [0], [1], [0, 0, 1, 1], [], []>} : vector<8x32xbf16>, vector<32x64xbf16>, vector<8x64xf32> -> vector<8x64xf32>
    %c0_3 = arith.constant 0 : index
    %c0_4 = arith.constant 0 : index
    %4 = vector.load %arg3[%c0_3, %c0_4] : memref<1x64xf32, #tpu.memory_space<vmem>>, vector<1x64xf32>
    %5 = vector.broadcast %4 : vector<1x64xf32> to vector<8x64xf32>
    %6 = arith.addf %3, %5 : vector<8x64xf32>
    %cst_5 = arith.constant 0.000000e+00 : f32
    %7 = vector.broadcast %cst_5 : f32 to vector<8x64xf32>
    %8 = arith.maximumf %6, %7 : vector<8x64xf32>
    %9 = arith.truncf %8 : vector<8x64xf32> to vector<8x64xbf16>
    %c0_6 = arith.constant 0 : index
    %c0_7 = arith.constant 0 : index
    %10 = vector.load %arg4[%c0_6, %c0_7] : memref<64x64xbf16, #tpu.memory_space<vmem>>, vector<64x64xbf16>
    %cst_8 = arith.constant dense<0.000000e+00> : vector<8x64xf32>
    %11 = tpu.matmul %9, %10, %cst_8 {dimension_numbers = #tpu.dot_dimension_numbers<[1], [0], [0], [1], [0, 0, 1, 1], [], []>} : vector<8x64xbf16>, vector<64x64xbf16>, vector<8x64xf32> -> vector<8x64xf32>
    %c0_9 = arith.constant 0 : index
    %c0_10 = arith.constant 0 : index
    %12 = vector.load %arg5[%c0_9, %c0_10] : memref<1x64xf32, #tpu.memory_space<vmem>>, vector<1x64xf32>
    %13 = vector.broadcast %12 : vector<1x64xf32> to vector<8x64xf32>
    %14 = arith.addf %11, %13 : vector<8x64xf32>
    %cst_11 = arith.constant 0.000000e+00 : f32
    %15 = vector.broadcast %cst_11 : f32 to vector<8x64xf32>
    %16 = arith.maximumf %14, %15 : vector<8x64xf32>
    %17 = arith.truncf %16 : vector<8x64xf32> to vector<8x64xbf16>
    %c0_12 = arith.constant 0 : index
    %c0_13 = arith.constant 0 : index
    %18 = vector.load %arg6[%c0_12, %c0_13] : memref<64x5xbf16, #tpu.memory_space<vmem>>, vector<64x5xbf16>
    %cst_14 = arith.constant dense<0.000000e+00> : vector<8x5xf32>
    %19 = tpu.matmul %17, %18, %cst_14 {dimension_numbers = #tpu.dot_dimension_numbers<[1], [0], [0], [1], [0, 0, 1, 1], [], []>} : vector<8x64xbf16>, vector<64x5xbf16>, vector<8x5xf32> -> vector<8x5xf32>
    %c0_15 = arith.constant 0 : index
    %c0_16 = arith.constant 0 : index
    %20 = vector.load %arg7[%c0_15, %c0_16] : memref<1x5xf32, #tpu.memory_space<vmem>>, vector<1x5xf32>
    %21 = vector.broadcast %20 : vector<1x5xf32> to vector<8x5xf32>
    %22 = arith.addf %19, %21 : vector<8x5xf32>
    %c0_17 = arith.constant 0 : index
    %c0_18 = arith.constant 0 : index
    %23 = vector.load %arg8[%c0_17, %c0_18] : memref<8x5xf32, #tpu.memory_space<vmem>>, vector<8x5xf32>
    tpu.vector_store %arg8[%c0_17, %c0_18], %22 {strides = array<i32>} : memref<8x5xf32, #tpu.memory_space<vmem>>, vector<8x5xf32>,
    return
  }
  func.func @transform_0(%arg0: i32) -> (i32, i32) {
    %c0_i32 = arith.constant 0 : i32
    %c0_i32_0 = arith.constant 0 : i32
    return %arg0, %c0_i32 : i32, i32
  }
  func.func @transform_1(%arg0: i32) -> (i32, i32) {
    %c0_i32 = arith.constant 0 : i32
    %c0_i32_0 = arith.constant 0 : i32
    %c0_i32_1 = arith.constant 0 : i32
    return %c0_i32, %c0_i32_0 : i32, i32
  }
  func.func @transform_2(%arg0: i32) -> (i32, i32) {
    %c0_i32 = arith.constant 0 : i32
    %c0_i32_0 = arith.constant 0 : i32
    %c0_i32_1 = arith.constant 0 : i32
    return %c0_i32, %c0_i32_0 : i32, i32
  }
  func.func @transform_3(%arg0: i32) -> (i32, i32) {
    %c0_i32 = arith.constant 0 : i32
    %c0_i32_0 = arith.constant 0 : i32
    %c0_i32_1 = arith.constant 0 : i32
    return %c0_i32, %c0_i32_0 : i32, i32
  }
  func.func @transform_4(%arg0: i32) -> (i32, i32) {
    %c0_i32 = arith.constant 0 : i32
    %c0_i32_0 = arith.constant 0 : i32
    %c0_i32_1 = arith.constant 0 : i32
    return %c0_i32, %c0_i32_0 : i32, i32
  }
  func.func @transform_5(%arg0: i32) -> (i32, i32) {
    %c0_i32 = arith.constant 0 : i32
    %c0_i32_0 = arith.constant 0 : i32
    %c0_i32_1 = arith.constant 0 : i32
    return %c0_i32, %c0_i32_0 : i32, i32
  }
  func.func @transform_6(%arg0: i32) -> (i32, i32) {
    %c0_i32 = arith.constant 0 : i32
    %c0_i32_0 = arith.constant 0 : i32
    %c0_i32_1 = arith.constant 0 : i32
    return %c0_i32, %c0_i32_0 : i32, i32
  }
  func.func @transform_7(%arg0: i32) -> (i32, i32) {
    %c0_i32 = arith.constant 0 : i32
    %c0_i32_0 = arith.constant 0 : i32
    return %arg0, %c0_i32 : i32, i32
  }
}

</mosaic_0001>

<llo_original>
// kernel: actor_critic_forward.1
$region0: #{actor_critic_forward.1}
  #allocation0 [shape = 'u32[]', space=smem, size = 0x4, offset = 0x4, fixed_abs, tag = 'smem constant byte address 0x4 - core index']
  #allocation1 [shape = 'u32[144,128]{1,0:T(1,128)}', space=vmem, size = 0x12000, scoped, tag = 'internal scratch']
  %s0 = inlined_call_operand.hbm [shape: f32[8,32], index: 0, kind: input, shape index: {}]
  %s1 = inlined_call_operand.vmem [shape: bf16[32,64], index: 1, kind: input, shape index: {}]
  %s2 = inlined_call_operand.vmem [shape: f32[1,64], index: 2, kind: input, shape index: {}]
  %s3 = inlined_call_operand.vmem [shape: bf16[64,64], index: 3, kind: input, shape index: {}]
  %s4 = inlined_call_operand.vmem [shape: f32[1,64], index: 4, kind: input, shape index: {}]
  %s5 = inlined_call_operand.vmem [shape: bf16[64,5], index: 5, kind: input, shape index: {}]
  %s6 = inlined_call_operand.vmem [shape: f32[1,5], index: 6, kind: input, shape index: {}]
  %s7 = inlined_call_operand.vmem [shape: f32[8,5], index: 7, kind: output, shape index: {}]
  %s8 = sld [smem:[#allocation0]]
  $region42: #{actor_critic_forward.1} parent=0
    _
  %s10 = ssub.s32 1, %s8
  %s11 = scalar_select 0, %s10, %s8
  $region1: #{actor_critic_forward.1} parent=0
    #allocation2 [shape = 'u8[4096]{0}', space=vmem, size = 0x1000, scoped, tag = 'input window, operand 0, single buffered']
    #allocation3 [shape = 's32[1]{0}', space=sflag, size = 0x4, scoped, tag = 'scoped memory for actor_critic_forward.1']
    %12 = vsyncpa [#allocation3], 0
    // Predicated region
    $region2: #{actor_critic_forward.1} parent=1 // pred_check
      _
    $region3: #{actor_critic_forward.1} parent=1 // pred_check_branch
      %14 = sbr.rel (0) target = $region5
    $region4: #{actor_critic_forward.1} parent=1 // pred_region
      %s16 = ssub.s32 128, 128
      %17 = vsyncadd [#allocation3], %s16
      %s19 = sshll.u32 [#allocation2], 4
      %s20 = int_to_ptr.vmem [resolvable:$true] %s19
      %22 = dma.hbm_to_vmem [thread:$0]  %s0, 128, %s20, [#allocation3]
    $region5: #{actor_critic_forward.1} parent=1 // pred_fallthru
      _
    // Predicated region
    $region6: #{actor_critic_forward.1} parent=1 // pred_check
      _
    $region7: #{actor_critic_forward.1} parent=1 // pred_check_branch
      %24 = sbr.rel (0) target = $region9
    $region8: #{actor_critic_forward.1} parent=1 // pred_region
      _
    $region9: #{actor_critic_forward.1} parent=1 // pred_fallthru
      _
    // Predicated region
    $region10: #{actor_critic_forward.1} parent=1 // pred_check
      _
    $region11: #{actor_critic_forward.1} parent=1 // pred_check_branch
      %26 = sbr.rel (0) target = $region13
    $region12: #{actor_critic_forward.1} parent=1 // pred_region
      _
    $region13: #{actor_critic_forward.1} parent=1 // pred_fallthru
      _
    // Predicated region
    $region14: #{actor_critic_forward.1} parent=1 // pred_check
      _
    $region15: #{actor_critic_forward.1} parent=1 // pred_check_branch
      %28 = sbr.rel (0) target = $region17
    $region16: #{actor_critic_forward.1} parent=1 // pred_region
      _
    $region17: #{actor_critic_forward.1} parent=1 // pred_fallthru
      _
    // Predicated region
    $region18: #{actor_critic_forward.1} parent=1 // pred_check
      _
    $region19: #{actor_critic_forward.1} parent=1 // pred_check_branch
      %30 = sbr.rel (0) target = $region21
    $region20: #{actor_critic_forward.1} parent=1 // pred_region
      _
    $region21: #{actor_critic_forward.1} parent=1 // pred_fallthru
      _
    // Predicated region
    $region22: #{actor_critic_forward.1} parent=1 // pred_check
      _
    $region23: #{actor_critic_forward.1} parent=1 // pred_check_branch
      %32 = sbr.rel (0) target = $region25
    $region24: #{actor_critic_forward.1} parent=1 // pred_region
      _
    $region25: #{actor_critic_forward.1} parent=1 // pred_fallthru
      _
    // Predicated region
    $region26: #{actor_critic_forward.1} parent=1 // pred_check
      _
    $region27: #{actor_critic_forward.1} parent=1 // pred_check_branch
      %34 = sbr.rel (0) target = $region29
    $region28: #{actor_critic_forward.1} parent=1 // pred_region
      _
    $region29: #{actor_critic_forward.1} parent=1 // pred_fallthru
      _
    // Predicated region
    $region30: #{actor_critic_forward.1} parent=1 // pred_check
      _
    $region31: #{actor_critic_forward.1} parent=1 // pred_check_branch
      %36 = sbr.rel (0) target = $region33
    $region32: #{actor_critic_forward.1} parent=1 // pred_region
      %37 = dma.done [#allocation3], 128
    $region33: #{actor_critic_forward.1} parent=1 // pred_fallthru
      _
    %v39 = vld [vmem:[#allocation2] sm:$0xff]
    %v40 = vpack.c.bf16 %v39, %v39
    %v41 = vld [vmem:[%s1] sm:$0xf]
    %v42 = vld [vmem:[%s1 + $0x4] sm:$0xf]
    %v43 = vld [vmem:[%s1 + $0x8] sm:$0xf]
    %v44 = vld [vmem:[%s1 + $0xc] sm:$0xf]
    %v45 = vld [vmem:[%s2] sm:$0x1]
    %v47 = vlaneseq
    %v48 = vshrl.u32 %v47, 7
    %v49 = vsub.s32 0, %v48
    %v50 = vrot.slane %v45, %v49
    %v56 = vunpack.c.l.b16 %v41
    %v57 = vunpack.c.l.b16 %v42
    %v58 = vunpack.c.l.b16 %v43
    %v59 = vunpack.c.l.b16 %v44
    %v60 = vpack.c.b16 %v57, %v56
    %v61 = vpack.c.b16 %v59, %v58
    %vm64 = vcmask 261120
    %v66 = vsel %vm64, %v40, 0
    %68 = vmatprep.subr.bf16.mxu0 0
    %69 = vmatpush1.bf16.msra.mxu0 %v60
    %70 = vmatprep.subr.bf16.mxu0 0
    %71 = vmatpush1.bf16.msra.mxu0 %v61
    %72 = vmatprep.subr.bf16.mxu0 0
    %73 = vmatpush1.bf16.msra.mxu0 0
    %74 = vmatprep.subr.bf16.mxu0 0
    %75 = vmatpush1.bf16.msra.mxu0 0
    %76 = vmatprep.subr.bf16.mxu0 0
    %77 = vmatpush1.bf16.msra.mxu0 0
    %78 = vmatprep.subr.bf16.mxu0 0
    %79 = vmatpush1.bf16.msra.mxu0 0
    %80 = vmatprep.subr.bf16.mxu0 0
    %81 = vmatpush1.bf16.msra.mxu0 0
    %82 = vmatprep.subr.bf16.mxu0 0
    %83 = vmatpush1.bf16.msra.mxu0 0
    %84 = vmatprep.subr.bf16.mxu0 0
    %85 = vmatpush1.bf16.msra.mxu0 0
    %86 = vmatprep.subr.bf16.mxu0 0
    %87 = vmatpush1.bf16.msra.mxu0 0
    %88 = vmatprep.subr.bf16.mxu0 0
    %89 = vmatpush1.bf16.msra.mxu0 0
    %90 = vmatprep.subr.bf16.mxu0 0
    %91 = vmatpush1.bf16.msra.mxu0 0
    %92 = vmatprep.subr.bf16.mxu0 0
    %93 = vmatpush1.bf16.msra.mxu0 0
    %94 = vmatprep.subr.bf16.mxu0 0
    %95 = vmatpush1.bf16.msra.mxu0 0
    %96 = vmatprep.subr.bf16.mxu0 0
    %97 = vmatpush1.bf16.msra.mxu0 0
    %98 = vmatprep.subr.bf16.mxu0 0
    %99 = vmatpush1.bf16.msra.mxu0 0
    %100 = vmatprep.mubr.bf16.mxu0 0
    %101 = vmatmul.mubr.bf16.gmra.mrb[0].mxu0 %v66
    %v102 = vpop.f32.mrb[0].mxu0
    %v103 = vadd.f32 %v50, %v102
    %v104 = vpop.f32.mrb[0].mxu0
    %v105 = vpop.f32.mrb[0].mxu0
    %v106 = vpop.f32.mrb[0].mxu0
    %107 = vdwg.mxu0
    %v108 = vmax.f32 %v103, 0.0
    %v109 = vpack.c.bf16 %v108, %v108
    %v110 = vld [vmem:[%s3] sm:$0xf]
    %v111 = vld [vmem:[%s3 + $0x4] sm:$0xf]
    %v112 = vld [vmem:[%s3 + $0x8] sm:$0xf]
    %v113 = vld [vmem:[%s3 + $0xc] sm:$0xf]
    %v114 = vld [vmem:[%s3 + $0x10] sm:$0xf]
    %v115 = vld [vmem:[%s3 + $0x14] sm:$0xf]
    %v116 = vld [vmem:[%s3 + $0x18] sm:$0xf]
    %v117 = vld [vmem:[%s3 + $0x1c] sm:$0xf]
    %v118 = vld [vmem:[%s4] sm:$0x1]
    %v120 = vlaneseq
    %v121 = vshrl.u32 %v120, 7
    %v122 = vsub.s32 0, %v121
    %v123 = vrot.slane %v118, %v122
    %v133 = vunpack.c.l.b16 %v110
    %v134 = vunpack.c.l.b16 %v111
    %v135 = vunpack.c.l.b16 %v112
    %v136 = vunpack.c.l.b16 %v113
    %v137 = vunpack.c.l.b16 %v114
    %v138 = vunpack.c.l.b16 %v115
    %v139 = vunpack.c.l.b16 %v116
    %v140 = vunpack.c.l.b16 %v117
    %v141 = vpack.c.b16 %v134, %v133
    %v142 = vpack.c.b16 %v136, %v135
    %v143 = vpack.c.b16 %v138, %v137
    %v144 = vpack.c.b16 %v140, %v139
    %vm149 = vcmask 523264
    %v151 = vsel %vm149, %v109, 0
    %153 = vmatprep.subr.bf16.mxu0 0
    %154 = vmatpush1.bf16.msra.mxu0 %v141
    %155 = vmatprep.subr.bf16.mxu0 0
    %156 = vmatpush1.bf16.msra.mxu0 %v142
    %157 = vmatprep.subr.bf16.mxu0 0
    %158 = vmatpush1.bf16.msra.mxu0 %v143
    %159 = vmatprep.subr.bf16.mxu0 0
    %160 = vmatpush1.bf16.msra.mxu0 %v144
    %161 = vmatprep.subr.bf16.mxu0 0
    %162 = vmatpush1.bf16.msra.mxu0 0
    %163 = vmatprep.subr.bf16.mxu0 0
    %164 = vmatpush1.bf16.msra.mxu0 0
    %165 = vmatprep.subr.bf16.mxu0 0
    %166 = vmatpush1.bf16.msra.mxu0 0
    %167 = vmatprep.subr.bf16.mxu0 0
    %168 = vmatpush1.bf16.msra.mxu0 0
    %169 = vmatprep.subr.bf16.mxu0 0
    %170 = vmatpush1.bf16.msra.mxu0 0
    %171 = vmatprep.subr.bf16.mxu0 0
    %172 = vmatpush1.bf16.msra.mxu0 0
    %173 = vmatprep.subr.bf16.mxu0 0
    %174 = vmatpush1.bf16.msra.mxu0 0
    %175 = vmatprep.subr.bf16.mxu0 0
    %176 = vmatpush1.bf16.msra.mxu0 0
    %177 = vmatprep.subr.bf16.mxu0 0
    %178 = vmatpush1.bf16.msra.mxu0 0
    %179 = vmatprep.subr.bf16.mxu0 0
    %180 = vmatpush1.bf16.msra.mxu0 0
    %181 = vmatprep.subr.bf16.mxu0 0
    %182 = vmatpush1.bf16.msra.mxu0 0
    %183 = vmatprep.subr.bf16.mxu0 0
    %184 = vmatpush1.bf16.msra.mxu0 0
    %185 = vmatprep.mubr.bf16.mxu0 0
    %186 = vmatmul.mubr.bf16.gmra.mrb[0].mxu0 %v151
    %v187 = vpop.f32.mrb[0].mxu0
    %v188 = vadd.f32 %v123, %v187
    %v189 = vpop.f32.mrb[0].mxu0
    %v190 = vpop.f32.mrb[0].mxu0
    %v191 = vpop.f32.mrb[0].mxu0
    %192 = vdwg.mxu0
    %v193 = vmax.f32 %v188, 0.0
    %v194 = vpack.c.bf16 %v193, %v193
    %v195 = vld [vmem:[%s5] sm:$0xf]
    %v196 = vld [vmem:[%s5 + $0x4] sm:$0xf]
    %v197 = vld [vmem:[%s5 + $0x8] sm:$0xf]
    %v198 = vld [vmem:[%s5 + $0xc] sm:$0xf]
    %v199 = vld [vmem:[%s5 + $0x10] sm:$0xf]
    %v200 = vld [vmem:[%s5 + $0x14] sm:$0xf]
    %v201 = vld [vmem:[%s5 + $0x18] sm:$0xf]
    %v202 = vld [vmem:[%s5 + $0x1c] sm:$0xf]
    %v203 = vld [vmem:[%s6] sm:$0x1]
    %v205 = vlaneseq
    %v206 = vshrl.u32 %v205, 7
    %v207 = vsub.s32 0, %v206
    %v208 = vrot.slane %v203, %v207
    %v218 = vunpack.c.l.b16 %v195
    %v219 = vunpack.c.l.b16 %v196
    %v220 = vunpack.c.l.b16 %v197
    %v221 = vunpack.c.l.b16 %v198
    %v222 = vunpack.c.l.b16 %v199
    %v223 = vunpack.c.l.b16 %v200
    %v224 = vunpack.c.l.b16 %v201
    %v225 = vunpack.c.l.b16 %v202
    %v226 = vpack.c.b16 %v219, %v218
    %v227 = vpack.c.b16 %v221, %v220
    %v228 = vpack.c.b16 %v223, %v222
    %v229 = vpack.c.b16 %v225, %v224
    %v235 = vsel %vm149, %v194, 0
    %237 = vmatprep.subr.bf16.mxu0 0
    %238 = vmatpush1.bf16.msra.mxu0 %v226
    %239 = vmatprep.subr.bf16.mxu0 0
    %240 = vmatpush1.bf16.msra.mxu0 %v227
    %241 = vmatprep.subr.bf16.mxu0 0
    %242 = vmatpush1.bf16.msra.mxu0 %v228
    %243 = vmatprep.subr.bf16.mxu0 0
    %244 = vmatpush1.bf16.msra.mxu0 %v229
    %245 = vmatprep.subr.bf16.mxu0 0
    %246 = vmatpush1.bf16.msra.mxu0 0
    %247 = vmatprep.subr.bf16.mxu0 0
    %248 = vmatpush1.bf16.msra.mxu0 0
    %249 = vmatprep.subr.bf16.mxu0 0
    %250 = vmatpush1.bf16.msra.mxu0 0
    %251 = vmatprep.subr.bf16.mxu0 0
    %252 = vmatpush1.bf16.msra.mxu0 0
    %253 = vmatprep.subr.bf16.mxu0 0
    %254 = vmatpush1.bf16.msra.mxu0 0
    %255 = vmatprep.subr.bf16.mxu0 0
    %256 = vmatpush1.bf16.msra.mxu0 0
    %257 = vmatprep.subr.bf16.mxu0 0
    %258 = vmatpush1.bf16.msra.mxu0 0
    %259 = vmatprep.subr.bf16.mxu0 0
    %260 = vmatpush1.bf16.msra.mxu0 0
    %261 = vmatprep.subr.bf16.mxu0 0
    %262 = vmatpush1.bf16.msra.mxu0 0
    %263 = vmatprep.subr.bf16.mxu0 0
    %264 = vmatpush1.bf16.msra.mxu0 0
    %265 = vmatprep.subr.bf16.mxu0 0
    %266 = vmatpush1.bf16.msra.mxu0 0
    %267 = vmatprep.subr.bf16.mxu0 0
    %268 = vmatpush1.bf16.msra.mxu0 0
    %269 = vmatprep.mubr.bf16.mxu0 0
    %270 = vmatmul.mubr.bf16.gmra.mrb[0].mxu0 %v235
    %v271 = vpop.f32.mrb[0].mxu0
    %v272 = vadd.f32 %v208, %v271
    %v273 = vpop.f32.mrb[0].mxu0
    %v274 = vpop.f32.mrb[0].mxu0
    %v275 = vpop.f32.mrb[0].mxu0
    %276 = vdwg.mxu0
    %vm277 = vcmask 39936
    %278 = vst.msk [vmem:[%s7] sm:$0xff] %vm277, %v272
    // Predicated region
    $region34: #{actor_critic_forward.1} parent=1 // pred_check
      _
    $region35: #{actor_critic_forward.1} parent=1 // pred_check_branch
      %280 = sbr.rel (0) target = $region37
    $region36: #{actor_critic_forward.1} parent=1 // pred_region
      _
    $region37: #{actor_critic_forward.1} parent=1 // pred_fallthru
      _
    // Predicated region
    $region38: #{actor_critic_forward.1} parent=1 // pred_check
      _
    $region39: #{actor_critic_forward.1} parent=1 // pred_check_branch
      %282 = sbr.rel (0) target = $region41
    $region40: #{actor_critic_forward.1} parent=1 // pred_region
      _
    $region41: #{actor_critic_forward.1} parent=1 // pred_fallthru
      _
    %283 = vsyncpa [#allocation3], 1

</llo_original>
